<compile_context>
chip_gen: v7x
topology: tpu7x:2x2x1
jax: 0.10.0
libtpu: 0.0.40
codegen_flags: <defaults>
</compile_context>

<pallas_src>
import functools

import jax
import jax.numpy as jnp
from jax.experimental import pallas as pl
from jax.experimental.pallas import tpu as pltpu

_LANE = 128
_TILE_BYTE_BUDGET = 8 * 1024 * 1024    # per-block byte budget for the two-pass path
_VMEM_LIMIT = 48 * 1024 * 1024         # <= v7x 64 MiB physical VMEM per TensorCore
_FUSED_SLAB_BYTES = 6 * 1024 * 1024    # 2x in + 2x out double-buffered slabs < ~24 MiB
_FUSED_MAX_C = 1024                    # keeps the in-kernel (C, C) band matrix small


# --------------------------------------------------------------------------- kernels
def _fused_eca_kernel(w_ref, x_ref, o_ref):
    """w_ref: SMEM (3,) f32 taps; x_ref/o_ref: (1, C, HW) whole per-batch slab."""
    C = x_ref.shape[1]
    hw = x_ref.shape[2]
    xs = x_ref[0]                                                     # (C, HW)
    # Global spatial mean per channel, accumulated in f32.
    mean = (jnp.sum(xs.astype(jnp.float32), axis=-1) * (1.0 / hw))[None, :]   # (1, C)
    # k=3 zero-padded cross-correlation over channels via a banded (C, C) matrix
    # built with iota + where (all VPU; no unaligned sublane shifts).
    ci = jax.lax.broadcasted_iota(jnp.int32, (C, C), 0)
    cj = jax.lax.broadcasted_iota(jnp.int32, (C, C), 1)
    band = (jnp.where(cj == ci - 1, w_ref[0], 0.0)
            + jnp.where(cj == ci, w_ref[1], 0.0)
            + jnp.where(cj == ci + 1, w_ref[2], 0.0))
    z = jnp.sum(band * mean, axis=-1, keepdims=True)                  # (C, 1) f32
    att = jax.nn.sigmoid(z).astype(o_ref.dtype)                       # (C, 1)
    o_ref[...] = (xs * att)[None, :, :]


def _partial_sum_kernel(x_ref, s_ref, *, hw):
    """x_ref: (1, C, T) input tile -> s_ref: (1, 1, 1, C) f32 partial spatial sum."""
    tile = x_ref.shape[2]
    xv = x_ref[...].astype(jnp.float32)                               # (1, C, T)
    if hw % tile != 0:
        # Ragged last tile: out-of-bounds read lanes are NOT guaranteed zero -> mask.
        lane = jax.lax.broadcasted_iota(jnp.int32, xv.shape, 2) + pl.program_id(1) * tile
        xv = jnp.where(lane < hw, xv, 0.0)
    s_ref[...] = jnp.sum(xv, axis=-1).reshape(1, 1, 1, -1)            # lane-dense along C


def _scale_kernel(att_ref, x_ref, o_ref):
    """att_ref: (1, C, 1) gate in x's dtype; x_ref/o_ref: (1, C, T) tiles."""
    o_ref[...] = x_ref[...] * att_ref[...]


# --------------------------------------------------------------------------- wrapper
def _choose_tile_hw(C, HW, itemsize, B):
    """Lane-dense HW tile sized purely from a byte budget (multiple of 128 or full HW)."""
    budget_lanes = max(_LANE, (_TILE_BYTE_BUDGET // (C * itemsize)) // _LANE * _LANE)
    if budget_lanes >= HW:
        tile = HW                               # one full-width block per batch row
    else:
        tile = budget_lanes                     # multiple of 128 (< HW): unmasked vst
    if B == 1 and tile == HW and HW > _LANE:
        # Keep >= 2 grid steps per batch so both v7x TensorCores get work.
        tile = pl.cdiv(pl.cdiv(HW, 2), _LANE) * _LANE
    return tile


def eca_forward(x, w, *, force_two_pass=False):
    """x: (B, C, H, W); w: (3,) conv1d taps (squeezed from the (1, 1, 3) Conv1d weight)."""
    B, C, H, W = x.shape
    HW = H * W
    itemsize = jnp.dtype(x.dtype).itemsize
    xr = x.reshape(B, C, HW)
    w32 = w.astype(jnp.float32)

    slab_bytes = C * HW * itemsize
    use_fused = (not force_two_pass) and (C <= _FUSED_MAX_C) and (slab_bytes <= _FUSED_SLAB_BYTES)

    if use_fused:
        # Single pass: 2N HBM traffic (read x once, write out once), no XLA glue.
        # TODO(synk): at B == 1 this is a single grid step, so only one v7x TensorCore
        # runs; acceptable since slabs on this path are <= 6 MiB.
        out = pl.pallas_call(
            _fused_eca_kernel,
            out_shape=jax.ShapeDtypeStruct((B, C, HW), x.dtype),
            grid_spec=pltpu.PrefetchScalarGridSpec(
                num_scalar_prefetch=0,
                grid=(B,),
                in_specs=[
                    pl.BlockSpec(memory_space=pltpu.MemorySpace.SMEM),   # conv taps (3,)
                    pl.BlockSpec((1, C, HW), lambda b: (b, 0, 0)),       # per-batch slab
                ],
                out_specs=pl.BlockSpec((1, C, HW), lambda b: (b, 0, 0)),
            ),
            compiler_params=pltpu.CompilerParams(
                dimension_semantics=("parallel",),
                vmem_limit_bytes=_VMEM_LIMIT,
            ),
        )(w32, xr)
        return out.reshape(B, C, H, W)

    # ------------------------- two-pass path (large per-batch slabs) -------------------------
    tile_hw = _choose_tile_hw(C, HW, itemsize, B)
    n_hw = pl.cdiv(HW, tile_hw)
    blk_bytes = C * tile_hw * itemsize
    vmem_limit = min(96 * 1024 * 1024, max(_VMEM_LIMIT, 5 * blk_bytes + 8 * 1024 * 1024))
    cparams = pltpu.CompilerParams(
        dimension_semantics=("parallel", "parallel"),
        vmem_limit_bytes=vmem_limit,
    )

    # ---- pass 1: tiled partial spatial sums (f32), lane-dense (1,1,1,C) stores ----
    partial = pl.pallas_call(
        functools.partial(_partial_sum_kernel, hw=HW),
        out_shape=jax.ShapeDtypeStruct((B, n_hw, 1, C), jnp.float32),
        grid_spec=pltpu.PrefetchScalarGridSpec(
            num_scalar_prefetch=0,
            grid=(B, n_hw),
            in_specs=[pl.BlockSpec((1, C, tile_hw), lambda b, t: (b, 0, t))],
            out_specs=pl.BlockSpec((1, 1, 1, C), lambda b, t: (b, t, 0, 0)),
        ),
        compiler_params=cparams,
    )(xr)

    # ---- glue on the tiny (B, C) array: mean -> k=3 channel conv -> sigmoid ----
    mean = partial[:, :, 0, :].sum(axis=1) * (1.0 / HW)            # (B, C) f32, true HW
    yp = jnp.pad(mean, ((0, 0), (1, 1)))                           # zero-pad channel ends
    z = w32[0] * yp[:, 0:C] + w32[1] * yp[:, 1:C + 1] + w32[2] * yp[:, 2:C + 2]
    att = jax.nn.sigmoid(z).astype(x.dtype)[:, :, None]            # (B, C, 1) in x dtype

    # ---- pass 2: elementwise channel rescale; ragged final block store masked by Pallas ----
    # TODO(synk): if the caller donates x, input_output_aliases={1: 0} could reuse its HBM buffer.
    out = pl.pallas_call(
        _scale_kernel,
        out_shape=jax.ShapeDtypeStruct((B, C, HW), x.dtype),
        grid_spec=pltpu.PrefetchScalarGridSpec(
            num_scalar_prefetch=0,
            grid=(B, n_hw),
            in_specs=[
                pl.BlockSpec((1, C, 1), lambda b, t: (b, 0, 0)),        # attention gate
                pl.BlockSpec((1, C, tile_hw), lambda b, t: (b, 0, t)),  # x tile
            ],
            out_specs=pl.BlockSpec((1, C, tile_hw), lambda b, t: (b, 0, t)),
        ),
        compiler_params=cparams,
    )(att, xr)
    return out.reshape(B, C, H, W)


def eca_reference(x, w):
    """Plain-JAX reference matching the PyTorch module."""
    B, C, H, W = x.shape
    y = jnp.mean(x.astype(jnp.float32), axis=(2, 3))               # (B, C)
    yp = jnp.pad(y, ((0, 0), (1, 1)))
    z = w[0] * yp[:, 0:C] + w[1] * yp[:, 1:C + 1] + w[2] * yp[:, 2:C + 2]
    att = jax.nn.sigmoid(z).astype(x.dtype)
    return x * att[:, :, None, None]


if __name__ == "__main__":
    key = jax.random.PRNGKey(0)
    kx, kw, kx2 = jax.random.split(key, 3)

    # Conv1d(1, 1, kernel_size=3, bias=False) weight has shape (1, 1, 3); keep the
    # squeezed (3,) taps, deterministically initialized.
    w = jax.random.normal(kw, (3,), dtype=jnp.float32) * 0.5

    # 1) fused single-pass path (default for small slabs), jitted.
    B, C, H, W = 2, 4, 16, 16
    x = jax.random.normal(kx, (B, C, H, W), dtype=jnp.float32)
    out = jax.block_until_ready(jax.jit(eca_forward)(x, w))
    ref = eca_reference(x, w)
    assert out.shape == x.shape
    assert jnp.allclose(out, ref, atol=1e-5, rtol=1e-5), "fused path mismatch vs reference"

    # 2) two-pass tiled path (even HW split).
    out2 = jax.block_until_ready(eca_forward(x, w, force_two_pass=True))
    assert jnp.allclose(out2, ref, atol=1e-5, rtol=1e-5), "two-pass path mismatch vs reference"

    # 3) two-pass tiled path with B == 1 grid split and a ragged (masked) last HW tile.
    x3 = jax.random.normal(kx2, (1, 4, 15, 20), dtype=jnp.float32)   # HW = 300 -> tiles 256 + 44
    out3 = jax.block_until_ready(eca_forward(x3, w, force_two_pass=True))
    ref3 = eca_reference(x3, w)
    assert jnp.allclose(out3, ref3, atol=1e-5, rtol=1e-5), "ragged two-pass mismatch vs reference"

    print("KERNEL_OK")
</pallas_src>

<mosaic_0001>
module attributes {stable_mosaic.version = 11 : i64} {
  func.func @_fused_eca_kernel(%arg0: i32, %arg1: memref<3xf32, #tpu.memory_space<smem>>, %arg2: memref<1x4x256xf32, #tpu.memory_space<vmem>>, %arg3: memref<1x4x256xf32, #tpu.memory_space<vmem>>) attributes {dimension_semantics = [#tpu.dimension_semantics<parallel>], iteration_bounds = array<i64: 2>, scalar_prefetch = 0 : i64, scratch_operands = 0 : i64, tpu.core_type = #tpu.core_type<tc>, window_params = [{transform_indices = @transform_0, window_bounds = array<i64: 3>}, {transform_indices = @transform_1, window_bounds = array<i64: 1, 4, 256>}, {transform_indices = @transform_2, window_bounds = array<i64: 1, 4, 256>}]} {
    %c0 = arith.constant 0 : index
    %c0_0 = arith.constant 0 : index
    %c0_1 = arith.constant 0 : index
    %0 = vector.load %arg2[%c0, %c0_0, %c0_1] : memref<1x4x256xf32, #tpu.memory_space<vmem>>, vector<1x4x256xf32>
    %1 = vector.shape_cast %0 : vector<1x4x256xf32> to vector<4x256xf32>
    %cst = arith.constant dense<0.000000e+00> : vector<4xf32>
    %2 = vector.multi_reduction <add>, %1, %cst [1] : vector<4x256xf32> to vector<4xf32>
    %cst_2 = arith.constant 3.906250e-03 : f32
    %3 = vector.broadcast %cst_2 : f32 to vector<4xf32>
    %4 = arith.mulf %2, %3 : vector<4xf32>
    %5 = vector.shape_cast %4 : vector<4xf32> to vector<1x4xf32>
    %6 = tpu.iota {dimensions = array<i32: 0>} : vector<4x4xi32>
    %7 = tpu.iota {dimensions = array<i32: 1>} : vector<4x4xi32>
    %c1_i32 = arith.constant 1 : i32
    %8 = vector.broadcast %c1_i32 : i32 to vector<4x4xi32>
    %9 = arith.subi %6, %8 : vector<4x4xi32>
    %10 = arith.cmpi eq, %7, %9 : vector<4x4xi32>
    %c0_3 = arith.constant 0 : index
    %11 = memref.load %arg1[%c0_3] : memref<3xf32, #tpu.memory_space<smem>>
    %cst_4 = arith.constant 0.000000e+00 : f32
    %12 = vector.broadcast %11 : f32 to vector<4x4xf32>
    %13 = vector.broadcast %cst_4 : f32 to vector<4x4xf32>
    %14 = arith.select %10, %12, %13 : vector<4x4xi1>, vector<4x4xf32>
    %15 = arith.cmpi eq, %7, %6 : vector<4x4xi32>
    %c1 = arith.constant 1 : index
    %16 = memref.load %arg1[%c1] : memref<3xf32, #tpu.memory_space<smem>>
    %cst_5 = arith.constant 0.000000e+00 : f32
    %17 = vector.broadcast %16 : f32 to vector<4x4xf32>
    %18 = vector.broadcast %cst_5 : f32 to vector<4x4xf32>
    %19 = arith.select %15, %17, %18 : vector<4x4xi1>, vector<4x4xf32>
    %20 = arith.addf %14, %19 : vector<4x4xf32>
    %c1_i32_6 = arith.constant 1 : i32
    %21 = vector.broadcast %c1_i32_6 : i32 to vector<4x4xi32>
    %22 = arith.addi %6, %21 : vector<4x4xi32>
    %23 = arith.cmpi eq, %7, %22 : vector<4x4xi32>
    %c2 = arith.constant 2 : index
    %24 = memref.load %arg1[%c2] : memref<3xf32, #tpu.memory_space<smem>>
    %cst_7 = arith.constant 0.000000e+00 : f32
    %25 = vector.broadcast %24 : f32 to vector<4x4xf32>
    %26 = vector.broadcast %cst_7 : f32 to vector<4x4xf32>
    %27 = arith.select %23, %25, %26 : vector<4x4xi1>, vector<4x4xf32>
    %28 = arith.addf %20, %27 : vector<4x4xf32>
    %29 = vector.broadcast %5 : vector<1x4xf32> to vector<4x4xf32>
    %30 = arith.mulf %28, %29 : vector<4x4xf32>
    %cst_8 = arith.constant dense<0.000000e+00> : vector<4xf32>
    %31 = vector.multi_reduction <add>, %30, %cst_8 [1] : vector<4x4xf32> to vector<4xf32>
    %32 = vector.shape_cast %31 : vector<4xf32> to vector<4x1xf32>
    %33 = arith.negf %32 : vector<4x1xf32>
    %34 = math.exp %33 : vector<4x1xf32>
    %cst_9 = arith.constant 1.000000e+00 : f32
    %35 = vector.broadcast %cst_9 : f32 to vector<4x1xf32>
    %36 = arith.addf %35, %34 : vector<4x1xf32>
    %37 = arith.divf %35, %36 : vector<4x1xf32>
    %38 = vector.broadcast %37 : vector<4x1xf32> to vector<4x256xf32>
    %39 = arith.mulf %1, %38 : vector<4x256xf32>
    %40 = vector.shape_cast %39 : vector<4x256xf32> to vector<1x4x256xf32>
    %c0_10 = arith.constant 0 : index
    %c0_11 = arith.constant 0 : index
    %c0_12 = arith.constant 0 : index
    %41 = vector.load %arg3[%c0_10, %c0_11, %c0_12] : memref<1x4x256xf32, #tpu.memory_space<vmem>>, vector<1x4x256xf32>
    tpu.vector_store %arg3[%c0_10, %c0_11, %c0_12], %40 {strides = array<i32>} : memref<1x4x256xf32, #tpu.memory_space<vmem>>, vector<1x4x256xf32>,
    return
  }
  func.func @transform_0(%arg0: i32) -> i32 {
    %c0_i32 = arith.constant 0 : i32
    %c0_i32_0 = arith.constant 0 : i32
    return %c0_i32 : i32
  }
  func.func @transform_1(%arg0: i32) -> (i32, i32, i32) {
    %c0_i32 = arith.constant 0 : i32
    %c0_i32_0 = arith.constant 0 : i32
    %c0_i32_1 = arith.constant 0 : i32
    return %arg0, %c0_i32, %c0_i32_0 : i32, i32, i32
  }
  func.func @transform_2(%arg0: i32) -> (i32, i32, i32) {
    %c0_i32 = arith.constant 0 : i32
    %c0_i32_0 = arith.constant 0 : i32
    %c0_i32_1 = arith.constant 0 : i32
    return %arg0, %c0_i32, %c0_i32_0 : i32, i32, i32
  }
}

</mosaic_0001>

<llo_original>
// kernel: eca_forward.1
$region0: #{eca_forward.1}
  #allocation0 [shape = 'u32[]', space=smem, size = 0x4, offset = 0x4, fixed_abs, tag = 'smem constant byte address 0x4 - core index']
  #allocation1 [shape = 'u32[144,128]{1,0:T(1,128)}', space=vmem, size = 0x12000, scoped, tag = 'internal scratch']
  %s0 = inlined_call_operand.vmem [shape: f32[3], index: 0, kind: input, shape index: {}]
  %s1 = inlined_call_operand.vmem [shape: f32[2,4,256], index: 1, kind: input, shape index: {}]
  %s2 = inlined_call_operand.vmem [shape: f32[2,4,256], index: 2, kind: output, shape index: {}]
  %s3 = sld [smem:[#allocation0]]
  $region45: #{eca_forward.1} parent=0
    _
  %s5 = ssub.s32 1, %s3
  %s6 = scalar_select 0, %s5, %s3
  $region1: #{eca_forward.1} parent=0
    #allocation2 [shape = 'u8[512]{0}', space=smem, size = 0x200, scoped, tag = 'input window, operand 0, single buffered']
    #allocation3 [shape = 's32[2]{0}', space=sflag, size = 0x8, scoped, tag = 'scoped memory for eca_forward.1']
    %7 = vsyncpa [#allocation3], 0
    loop: start=0, step=1, limit=4
    $region2: #{eca_forward.1} parent=1 // loop_pre_header
      _
    $region3: #{eca_forward.1} parent=1 // loop_header
      %s9 = sphi 0, %s13
      %p10 = scmp.ge.s32.totalorder %s9, 4
      %s17 = sphi 0, %s17
      %s19 = sphi 0, %s17
      %s20 = sphi 0, %s19
      %s34 = sphi 0, %s20
      %s40 = sphi 0, %s42
      %s43 = sphi 0, %s40
      %s44 = sphi 0, %s43
      %s60 = sphi 0, %s44
      %s66 = sphi 0, %s68
      %s69 = sphi 0, %s66
      %s70 = sphi 0, %s69
      %s86 = sphi 0, %s70
    $region4: #{eca_forward.1} parent=1 // loop_header_branch
      %12 = sbr.rel (%p10) target = $region8
    $region5: #{eca_forward.1} parent=1 // loop_body
      %s14 = ssub.s32 %s9, 1
      %s15 = ssub.s32 %s9, 2
      %s16 = sadd.s32 %s9, 1
      %s18 = sadd.s32 %s17, 1
      %p21 = scmp.eq.s32.totalorder %s9, 1
      %p22 = scmp.ne.s32.totalorder %s17, %s19
      %p23 = scmp.eq.s32.totalorder %s9, 0
      %p24 = por %p22, %p23
      %p25 = scmp.ne.s32.totalorder %s17, %s19
      %p26 = scmp.eq.s32.totalorder %s14, 1
      %p27 = por %p25, %p26
      %p28 = scmp.ne.s32.totalorder %s19, %s20
      %p29 = scmp.eq.s32.totalorder %s14, 0
      %p30 = por %p28, %p29
      %p31 = scmp.ne.s32.totalorder %s19, %s20
      %p32 = scmp.eq.s32.totalorder %s15, 1
      %p33 = por %p31, %p32
      %p35 = scmp.ne.s32.totalorder %s20, %s34
      %p36 = scmp.eq.s32.totalorder %s15, 0
      %p37 = por %p35, %p36
      %s38 = ssub.s32 %s9, %s16
      %p39 = scmp.eq.s32.totalorder %s38, 0
      %s41 = sadd.s32 %s40, 1
      %s42 = scalar_select %p39, %s40, %s41
      %p45 = pneg %p39
      %p46 = scmp.eq.s32.totalorder %s9, 1
      %p47 = por %p45, %p46
      %p48 = scmp.ne.s32.totalorder %s40, %s43
      %p49 = scmp.eq.s32.totalorder %s9, 0
      %p50 = por %p48, %p49
      %p51 = scmp.ne.s32.totalorder %s40, %s43
      %p52 = scmp.eq.s32.totalorder %s14, 1
      %p53 = por %p51, %p52
      %p54 = scmp.ne.s32.totalorder %s43, %s44
      %p55 = scmp.eq.s32.totalorder %s14, 0
      %p56 = por %p54, %p55
      %p57 = scmp.ne.s32.totalorder %s43, %s44
      %p58 = scmp.eq.s32.totalorder %s15, 1
      %p59 = por %p57, %p58
      %p61 = scmp.ne.s32.totalorder %s44, %s60
      %p62 = scmp.eq.s32.totalorder %s15, 0
      %p63 = por %p61, %p62
      %s64 = ssub.s32 %s9, %s16
      %p65 = scmp.eq.s32.totalorder %s64, 0
      %s67 = sadd.s32 %s66, 1
      %s68 = scalar_select %p65, %s66, %s67
      %p71 = pneg %p65
      %p72 = scmp.eq.s32.totalorder %s9, 1
      %p73 = por %p71, %p72
      %p74 = scmp.ne.s32.totalorder %s66, %s69
      %p75 = scmp.eq.s32.totalorder %s9, 0
      %p76 = por %p74, %p75
      %p77 = scmp.ne.s32.totalorder %s66, %s69
      %p78 = scmp.eq.s32.totalorder %s14, 1
      %p79 = por %p77, %p78
      %p80 = scmp.ne.s32.totalorder %s69, %s70
      %p81 = scmp.eq.s32.totalorder %s14, 0
      %p82 = por %p80, %p81
      %p83 = scmp.ne.s32.totalorder %s69, %s70
      %p84 = scmp.eq.s32.totalorder %s15, 1
      %p85 = por %p83, %p84
      %p87 = scmp.ne.s32.totalorder %s70, %s86
      %p88 = scmp.eq.s32.totalorder %s15, 0
      %p89 = por %p87, %p88
      %p90 = scmp.le.s32.totalorder 1, %s9
      %p91 = scmp.lt.s32.totalorder %s9, 3
      %p92 = pnand %p90, %p91
      %p93 = pneg %p92
      // Predicated region
      $region9: #{eca_forward.1} parent=5 // pred_check
        _
      $region10: #{eca_forward.1} parent=5 // pred_check_branch
        %95 = sbr.rel (%p92) target = $region12
      $region11: #{eca_forward.1} parent=5 // pred_region
        %s96 = ssub.s32 %s9, 1
        // Predicated region
        $region13: #{eca_forward.1} parent=11 // pred_check
          %p97 = pneg %p30
        $region14: #{eca_forward.1} parent=11 // pred_check_branch
          %99 = sbr.rel (%p97) target = $region16
        $region15: #{eca_forward.1} parent=11 // pred_region
          %s101 = ssub.s32 16, 16
          %102 = vsyncadd [#allocation3], %s101
          %s104 = sshll.u32 %s0, 4
          %s105 = int_to_ptr.vmem [resolvable:$true] %s104
          %107 = dma.vmem_to_smem %s105, 16, [#allocation2], [#allocation3]
        $region16: #{eca_forward.1} parent=11 // pred_fallthru
          _
      $region12: #{eca_forward.1} parent=5 // pred_fallthru
        _
      %p108 = scmp.lt.s32.totalorder %s9, 2
      // Predicated region
      $region17: #{eca_forward.1} parent=5 // pred_check
        %p109 = pneg %p108
      $region18: #{eca_forward.1} parent=5 // pred_check_branch
        %111 = sbr.rel (%p109) target = $region20
      $region19: #{eca_forward.1} parent=5 // pred_region
        // Predicated region
        $region21: #{eca_forward.1} parent=19 // pred_check
          %p112 = pneg %p50
        $region22: #{eca_forward.1} parent=19 // pred_check_branch
          %114 = sbr.rel (%p112) target = $region24
        $region23: #{eca_forward.1} parent=19 // pred_region
          %p115 = scmp.lt.s32.totalorder %s9, 1
          %s116 = scalar_select %p115, %s9, 1
          %s117 = smul.addr %s116, 2
          %s118 = smul.addr %s117, 4
          %s119 = scalar_lea.vmem %s1, %s118
        $region24: #{eca_forward.1} parent=19 // pred_fallthru
          _
      $region20: #{eca_forward.1} parent=5 // pred_fallthru
        _
      %p120 = scmp.le.s32.totalorder 1, %s9
      %p121 = scmp.lt.s32.totalorder %s9, 3
      %p122 = pnand %p120, %p121
      %p123 = pneg %p122
      // Predicated region
      $region25: #{eca_forward.1} parent=5 // pred_check
        _
      $region26: #{eca_forward.1} parent=5 // pred_check_branch
        %125 = sbr.rel (%p122) target = $region28
      $region27: #{eca_forward.1} parent=5 // pred_region
        %s126 = ssub.s32 %s9, 1
        // Predicated region
        $region29: #{eca_forward.1} parent=27 // pred_check
          %p127 = pneg %p30
        $region30: #{eca_forward.1} parent=27 // pred_check_branch
          %129 = sbr.rel (%p127) target = $region32
        $region31: #{eca_forward.1} parent=27 // pred_region
          %130 = dma.done [#allocation3], 16
        $region32: #{eca_forward.1} parent=27 // pred_fallthru
          _
        %131 = sfence
        %p132 = pneg %p30
        %p133 = pneg %p27
        %p134 = scmp.lt.s32.totalorder %s14, 1
        %s135 = scalar_select %p134, %s14, 1
        %s136 = smul.addr %s135, 2
        %s137 = smul.addr %s136, 4
        %s138 = scalar_lea.vmem %s1, %s137
        %p139 = pneg %p56
        %p140 = pneg %p53
        %p141 = pneg %p82
        %p142 = pneg %p79
        %p143 = scmp.lt.s32.totalorder %s14, 1
        %s144 = scalar_select %p143, %s14, 1
        %s145 = smul.addr %s144, 2
        %s146 = smul.addr %s145, 4
        %s147 = scalar_lea.vmem %s2, %s146
        %p148 = scmp.lt.s32.totalorder %s14, 1
        %s149 = scalar_select %p148, %s14, 1
        %s150 = smul.addr %s149, 2
        %s151 = smul.addr %s150, 4
        %s152 = scalar_lea.vmem %s1, %s151
        %p153 = scmp.lt.s32.totalorder %s14, 1
        %s154 = scalar_select %p153, %s14, 1
        %s155 = smul.addr %s154, 2
        %s156 = smul.addr %s155, 4
        %s157 = scalar_lea.vmem %s2, %s156
        %v158 = vld [vmem:[%s152] sm:$0xff]
        %v160 = vcombine.high %v158, %v158
        %vm162 = vcmask 1043456
        %v163 = vsel %vm162, %v158, 0.0
        %v164 = vsel %vm162, %v160, 0.0
        %v165 = vadd.f32 %v163, %v164
        %166 = vadd.xlane.f32.xlu0 %v165
        %v167 = vpop.xlane.xlu0 %166
        %v168 = vmul.f32 %v167, 0.00390625
        %v169 = vlaneseq
        %v170 = vshrl.u32 %v169, 7
        %v171 = vlaneseq
        %v172 = vand.u32 %v171, 127
        %v173 = vsub.s32 %v170, 1
        %vm174 = vcmp.eq.s32.totalorder %v172, %v173
        %s175 = sld [smem:[#allocation2]]
        %v176 = vstv %s175
        %v177 = vsel %vm174, %v176, 0.0
        %vm178 = vcmp.eq.s32.totalorder %v172, %v170
        %s179 = sld [smem:[#allocation2 + $0x1]]
        %v180 = vstv %s179
        %v181 = vsel %vm178, %v180, 0.0
        %v182 = vadd.f32 %v177, %v181
        %v183 = vadd.s32 %v170, 1
        %vm184 = vcmp.eq.s32.totalorder %v172, %v183
        %s185 = sld [smem:[#allocation2 + $0x2]]
        %v186 = vstv %s185
        %v187 = vsel %vm184, %v186, 0.0
        %v188 = vadd.f32 %v182, %v187
        %v190 = vlaneseq
        %v191 = vshrl.u32 %v190, 7
        %v192 = vsub.s32 %v172, %v191
        %v193 = vrot.slane %v168, %v192
        %vm194 = vcmask 1042434
        %v195 = vsel %vm194, %v193, %v193
        %vm196 = vcmask 1043459
        %v197 = vsel %vm196, %v193, %v195
        %v199 = vmul.f32 %v188, %v197
        %vm200 = vcmask 27648
        %v201 = vsel %vm200, %v199, 0.0
        %202 = vadd.xlane.f32.xlu0 %v201
        %v203 = vpop.xlane.xlu0 %202
        %v204 = vxor.u32 %v203, 2147483648
        %v205 = vmul.f32 %v204, 1.442695
        %v206 = vpow.pop %v205
        %v207 = vadd.f32 %v206, 1.0
        %v208 = vrcp.pop %v207
        %v209 = vmul.f32 1.0, %v208
        %v212 = vunpack.c.l.s4 839922192
        %v213 = vunpack.c.0.s8 %v212
        %v214 = vlaneseq
        %v215 = vshrl.u32 %v214, 7
        %v216 = vsub.s32 %v213, %v215
        %v217 = vrot.slane %v209, %v216
        %v219 = vmul.f32 %v158, %v217
        %220 = vst [vmem:[%s157] sm:$0xff] %v219
        %p221 = scmp.lt.s32.totalorder %s14, 1
        %s222 = scalar_select %p221, %s14, 1
        %s223 = smul.addr %s222, 2
        %s224 = smul.addr %s223, 4
        %s225 = scalar_lea.vmem %s2, %s224
        // Predicated region
        $region33: #{eca_forward.1} parent=27 // pred_check
          %p226 = pneg %p79
        $region34: #{eca_forward.1} parent=27 // pred_check_branch
          %228 = sbr.rel (%p226) target = $region36
        $region35: #{eca_forward.1} parent=27 // pred_region
          _
        $region36: #{eca_forward.1} parent=27 // pred_fallthru
          _
      $region28: #{eca_forward.1} parent=5 // pred_fallthru
        _
      %p229 = scmp.le.s32.totalorder 2, %s9
      // Predicated region
      $region37: #{eca_forward.1} parent=5 // pred_check
        %p230 = pneg %p229
      $region38: #{eca_forward.1} parent=5 // pred_check_branch
        %232 = sbr.rel (%p230) target = $region40
      $region39: #{eca_forward.1} parent=5 // pred_region
        %s233 = ssub.s32 %s9, 2
        // Predicated region
        $region41: #{eca_forward.1} parent=39 // pred_check
          %p234 = pneg %p85
        $region42: #{eca_forward.1} parent=39 // pred_check_branch
          %236 = sbr.rel (%p234) target = $region44
        $region43: #{eca_forward.1} parent=39 // pred_region
          %p237 = scmp.lt.s32.totalorder %s15, 1
          %s238 = scalar_select %p237, %s15, 1
          %s239 = smul.addr %s238, 2
          %s240 = smul.addr %s239, 4
          %s241 = scalar_lea.vmem %s2, %s240
        $region44: #{eca_forward.1} parent=39 // pred_fallthru
          _
      $region40: #{eca_forward.1} parent=5 // pred_fallthru
        _
    $region6: #{eca_forward.1} parent=1 // loop_footer
      %s13 = sadd.s32 1, %s9
    $region7: #{eca_forward.1} parent=1 // loop_footer_branch
      %8 = sbr.rel target = $region3
    $region8: #{eca_forward.1} parent=1 // loop_exit
      _
    %242 = vsyncpa [#allocation3], 1
    %s243 = scalar_lea.sflag [#allocation3], 1
    %244 = vsyncpa %s243, 1

</llo_original>
